<compile_context>
chip_gen: v7x
topology: tpu7x:2x2x1
jax: 0.10.0
libtpu: 0.0.40
codegen_flags: <defaults>
</compile_context>

<pallas_src>
import functools

import jax
import jax.numpy as jnp
from jax.experimental import pallas as pl
from jax.experimental.pallas import tpu as pltpu


def _round_up(x: int, m: int) -> int:
    return ((x + m - 1) // m) * m


def _fused_mlp_kernel(x_ref, w_ref, b_ref, o_ref, h0, h1, *,
                      num_layers: int, has_head: bool, d_out_pad: int):
    """One grid step = (batch tile b, layer l).

    x_ref : (tb, Dmax)        padded input tile (read only at l == 0)
    w_ref : (1, Dmax, Dmax)   layer l's pre-transposed, zero-padded weight
    b_ref : (1, 1, Dmax)      layer l's zero-padded bias
    o_ref : (tb, Dout_pad)    output tile (written only at l == last)
    h0/h1 : (tb, Dmax) f32    ping-pong activation buffers resident in VMEM
    """
    l = pl.program_id(1)

    # Load the input activation into VMEM once per batch tile.
    @pl.when(l == 0)
    def _():
        h0[...] = x_ref[...]

    def layer(src, dst):
        # MXU matmul with f32 accumulation; bias is added once per layer
        # (no K-reduction grid axis: the whole padded K fits in VMEM).
        y = jnp.dot(src[...], w_ref[0], preferred_element_type=jnp.float32)
        y = y + b_ref[0]
        if has_head:
            not_head = l != num_layers - 1
            y = jnp.where(not_head, jnp.maximum(y, 0.0), y)
        else:
            y = jnp.maximum(y, 0.0)
        dst[...] = y

    # Ping-pong between the two resident activation buffers.
    @pl.when(l % 2 == 0)
    def _():
        layer(h0, h1)

    @pl.when(l % 2 == 1)
    def _():
        layer(h1, h0)

    # Write the (lane-dense) output only after the last layer.
    @pl.when(l == num_layers - 1)
    def _():
        final = h1 if (num_layers - 1) % 2 == 0 else h0
        o_ref[...] = final[:, :d_out_pad].astype(o_ref.dtype)


def init_mlp_params(key, input_dim, hidden_dims, output_dim):
    """Synthetic init mirroring the PyTorch module's parameter shapes.

    Hidden layers: weight (out, in) ~ xavier_uniform(gain=sqrt(2)), bias = 0.01.
    Output layer:  weight (out, in) ~ xavier_uniform(gain=sqrt(2)), bias = 0.0.
    """
    gain = jnp.sqrt(2.0)  # nn.init.calculate_gain('relu')
    dims = [input_dim] + list(hidden_dims)
    params = []
    for d_in, d_out in zip(dims[:-1], dims[1:]):
        key, sub = jax.random.split(key)
        limit = gain * jnp.sqrt(6.0 / (d_in + d_out))
        w = jax.random.uniform(sub, (d_out, d_in), jnp.float32, -limit, limit)
        b = jnp.full((d_out,), 0.01, jnp.float32)
        params.append((w, b))
    if output_dim is not None:
        key, sub = jax.random.split(key)
        d_in, d_out = dims[-1], output_dim
        limit = gain * jnp.sqrt(6.0 / (d_in + d_out))
        w = jax.random.uniform(sub, (d_out, d_in), jnp.float32, -limit, limit)
        b = jnp.zeros((d_out,), jnp.float32)
        params.append((w, b))
    return params


def pack_mlp_params(params, has_output_head: bool):
    """One-time packing: transpose to (in, out), zero-pad to a lane-dense
    (L, Dmax, Dmax) weight slab + (L, 1, Dmax) bias slab. Done once, NOT per
    forward call (removes the per-call HBM weight transpose)."""
    dims_in = [w.shape[1] for w, _ in params]
    dims_out = [w.shape[0] for w, _ in params]
    d_max = _round_up(max(dims_in + dims_out), 128)
    num_layers = len(params)

    w_stack = jnp.zeros((num_layers, d_max, d_max), jnp.float32)
    b_stack = jnp.zeros((num_layers, 1, d_max), jnp.float32)
    for i, (w, b) in enumerate(params):
        w_t = jnp.transpose(w)  # (in, out) — once, at pack time
        w_stack = w_stack.at[i, :w_t.shape[0], :w_t.shape[1]].set(w_t)
        b_stack = b_stack.at[i, 0, :b.shape[0]].set(b)

    meta = dict(num_layers=num_layers, has_head=has_output_head,
                d_in=dims_in[0], d_out=dims_out[-1], d_max=d_max)
    return w_stack, b_stack, meta


def mlp_forward(x, w_stack, b_stack, meta, *, tile_b: int = 128):
    """Fused forward pass. x: (B, D_in) f32. Returns (B, D_out)."""
    B, d_in = x.shape
    num_layers = meta["num_layers"]
    d_max = meta["d_max"]
    d_out = meta["d_out"]
    d_out_pad = _round_up(d_out, 128)

    # Batch tile: multiple of 8 sublanes, capped at 128 rows; batch axis is the
    # megacore-parallel axis (sharded across the 2 TCs on v7x when >= 2 steps).
    tb = min(tile_b, _round_up(B, 8))
    b_pad = _round_up(B, tb)

    # Zero-pad the input into the shared Dmax-wide activation layout. The
    # padded columns are numerically inert because padded weight rows are zero.
    x_pad = jnp.zeros((b_pad, d_max), x.dtype).at[:B, :d_in].set(x)

    grid = (b_pad // tb, num_layers)
    out = pl.pallas_call(
        functools.partial(_fused_mlp_kernel, num_layers=num_layers,
                          has_head=meta["has_head"], d_out_pad=d_out_pad),
        out_shape=jax.ShapeDtypeStruct((b_pad, d_out_pad), x.dtype),
        grid=grid,
        in_specs=[
            # Input tile: same block for every layer step (read only at l==0).
            pl.BlockSpec((tb, d_max), lambda b, l: (b, 0)),
            # Per-layer weight / bias streamed along the layer axis
            # (auto double-buffered -> DMA of layer l+1 hides under layer l).
            pl.BlockSpec((1, d_max, d_max), lambda b, l: (l, 0, 0)),
            pl.BlockSpec((1, 1, d_max), lambda b, l: (l, 0, 0)),
        ],
        # Output block is invariant along the layer axis -> stays resident;
        # written once at l == num_layers - 1. Lane-dense (multiple of 128).
        out_specs=pl.BlockSpec((tb, d_out_pad), lambda b, l: (b, 0)),
        scratch_shapes=[
            pltpu.VMEM((tb, d_max), jnp.float32),  # activation ping
            pltpu.VMEM((tb, d_max), jnp.float32),  # activation pong
        ],
        compiler_params=pltpu.CompilerParams(
            dimension_semantics=("parallel", "arbitrary")),
    )(x_pad, w_stack, b_stack)

    return out[:B, :d_out]


def mlp_reference(x, params, has_output_head: bool):
    n = len(params)
    for idx, (w, b) in enumerate(params):
        y = x @ w.T + b
        if not (has_output_head and idx == n - 1):
            y = jnp.maximum(y, 0.0)
        x = y
    return x


if __name__ == "__main__":
    # TODO(synk): nn.Dropout is a no-op here (dropout_rate=None / eval mode); not modeled.
    key = jax.random.PRNGKey(0)
    batch, input_dim = 256, 16          # batch >= 2*tb so the parallel axis has 2 steps
    hidden_dims = (32, 32)
    output_dim = 8

    kx, kp = jax.random.split(key)
    x = jax.random.normal(kx, (batch, input_dim), jnp.float32)
    params = init_mlp_params(kp, input_dim, hidden_dims, output_dim)

    # One-time weight packing (transpose + pad + stack); forward has no HBM
    # transposes or per-layer pallas_call overhead.
    w_stack, b_stack, meta = pack_mlp_params(params, has_output_head=True)

    out = mlp_forward(x, w_stack, b_stack, meta)
    out = jax.block_until_ready(out)

    ref = mlp_reference(x, params, has_output_head=True)
    assert out.shape == (batch, output_dim)
    assert jnp.allclose(out, ref, atol=1e-5, rtol=1e-5), "mismatch vs reference"
    print("KERNEL_OK")
</pallas_src>

<mosaic_0001>
module attributes {stable_mosaic.version = 11 : i64} {
  func.func @_fused_mlp_kernel(%arg0: i32, %arg1: i32, %arg2: memref<128x128xf32, #tpu.memory_space<vmem>>, %arg3: memref<1x128x128xf32, #tpu.memory_space<vmem>>, %arg4: memref<1x1x128xf32, #tpu.memory_space<vmem>>, %arg5: memref<128x128xf32, #tpu.memory_space<vmem>>, %arg6: memref<128x128xf32, #tpu.memory_space<vmem>>, %arg7: memref<128x128xf32, #tpu.memory_space<vmem>>) attributes {dimension_semantics = [#tpu.dimension_semantics<parallel>, #tpu.dimension_semantics<arbitrary>], iteration_bounds = array<i64: 2, 3>, scalar_prefetch = 0 : i64, scratch_operands = 2 : i64, tpu.core_type = #tpu.core_type<tc>, window_params = [{transform_indices = @transform_0, window_bounds = array<i64: 128, 128>}, {transform_indices = @transform_1, window_bounds = array<i64: 1, 128, 128>}, {transform_indices = @transform_2, window_bounds = array<i64: 1, 1, 128>}, {transform_indices = @transform_3, window_bounds = array<i64: 128, 128>}]} {
    %c0_i32 = arith.constant 0 : i32
    %0 = arith.cmpi eq, %arg1, %c0_i32 : i32
    %1 = arith.extui %0 : i1 to i32
    %c0_i32_0 = arith.constant 0 : i32
    %2 = arith.cmpi ne, %1, %c0_i32_0 : i32
    scf.if %2 {
      %c0 = arith.constant 0 : index
      %c0_17 = arith.constant 0 : index
      %32 = vector.load %arg2[%c0, %c0_17] : memref<128x128xf32, #tpu.memory_space<vmem>>, vector<128x128xf32>
      %c0_18 = arith.constant 0 : index
      %c0_19 = arith.constant 0 : index
      %33 = vector.load %arg6[%c0_18, %c0_19] : memref<128x128xf32, #tpu.memory_space<vmem>>, vector<128x128xf32>
      tpu.vector_store %arg6[%c0_18, %c0_19], %32 {strides = array<i32>} : memref<128x128xf32, #tpu.memory_space<vmem>>, vector<128x128xf32>,
    } else {
    }
    %c2_i32 = arith.constant 2 : i32
    %c0_i32_1 = arith.constant 0 : i32
    %3 = arith.cmpi eq, %c2_i32, %c0_i32_1 : i32
    %c1_i32 = arith.constant 1 : i32
    %4 = arith.select %3, %c1_i32, %c2_i32 : i32
    %5 = arith.remsi %arg1, %4 : i32
    %c0_i32_2 = arith.constant 0 : i32
    %6 = arith.cmpi ne, %5, %c0_i32_2 : i32
    %c0_i32_3 = arith.constant 0 : i32
    %7 = arith.cmpi slt, %5, %c0_i32_3 : i32
    %c0_i32_4 = arith.constant 0 : i32
    %8 = arith.cmpi slt, %4, %c0_i32_4 : i32
    %9 = arith.xori %7, %8 : i1
    %10 = arith.andi %9, %6 : i1
    %11 = arith.addi %5, %4 : i32
    %12 = arith.select %10, %11, %5 : i32
    %c0_i32_5 = arith.constant 0 : i32
    %13 = arith.cmpi eq, %12, %c0_i32_5 : i32
    %14 = arith.extui %13 : i1 to i32
    %c0_i32_6 = arith.constant 0 : i32
    %15 = arith.cmpi ne, %14, %c0_i32_6 : i32
    scf.if %15 {
      %c0 = arith.constant 0 : index
      %c0_17 = arith.constant 0 : index
      %32 = vector.load %arg6[%c0, %c0_17] : memref<128x128xf32, #tpu.memory_space<vmem>>, vector<128x128xf32>
      %c0_18 = arith.constant 0 : index
      %c0_19 = arith.constant 0 : index
      %c0_20 = arith.constant 0 : index
      %33 = vector.load %arg3[%c0_18, %c0_19, %c0_20] : memref<1x128x128xf32, #tpu.memory_space<vmem>>, vector<1x128x128xf32>
      %34 = vector.shape_cast %33 : vector<1x128x128xf32> to vector<128x128xf32>
      %cst = arith.constant dense<0.000000e+00> : vector<128x128xf32>
      %35 = tpu.matmul %32, %34, %cst {dimension_numbers = #tpu.dot_dimension_numbers<[1], [0], [0], [1], [0, 0, 1, 1], [], []>} : vector<128x128xf32>, vector<128x128xf32>, vector<128x128xf32> -> vector<128x128xf32>
      %c0_21 = arith.constant 0 : index
      %c0_22 = arith.constant 0 : index
      %c0_23 = arith.constant 0 : index
      %36 = vector.load %arg4[%c0_21, %c0_22, %c0_23] : memref<1x1x128xf32, #tpu.memory_space<vmem>>, vector<1x1x128xf32>
      %37 = vector.shape_cast %36 : vector<1x1x128xf32> to vector<1x128xf32>
      %38 = vector.broadcast %37 : vector<1x128xf32> to vector<128x128xf32>
      %39 = arith.addf %35, %38 : vector<128x128xf32>
      %c2_i32_24 = arith.constant 2 : i32
      %40 = arith.cmpi ne, %arg1, %c2_i32_24 : i32
      %cst_25 = arith.constant 0.000000e+00 : f32
      %41 = vector.broadcast %cst_25 : f32 to vector<128x128xf32>
      %42 = arith.maximumf %39, %41 : vector<128x128xf32>
      %43 = arith.select %40, %42, %39 : vector<128x128xf32>
      %c0_26 = arith.constant 0 : index
      %c0_27 = arith.constant 0 : index
      %44 = vector.load %arg7[%c0_26, %c0_27] : memref<128x128xf32, #tpu.memory_space<vmem>>, vector<128x128xf32>
      tpu.vector_store %arg7[%c0_26, %c0_27], %43 {strides = array<i32>} : memref<128x128xf32, #tpu.memory_space<vmem>>, vector<128x128xf32>,
    } else {
    }
    %c2_i32_7 = arith.constant 2 : i32
    %c0_i32_8 = arith.constant 0 : i32
    %16 = arith.cmpi eq, %c2_i32_7, %c0_i32_8 : i32
    %c1_i32_9 = arith.constant 1 : i32
    %17 = arith.select %16, %c1_i32_9, %c2_i32_7 : i32
    %18 = arith.remsi %arg1, %17 : i32
    %c0_i32_10 = arith.constant 0 : i32
    %19 = arith.cmpi ne, %18, %c0_i32_10 : i32
    %c0_i32_11 = arith.constant 0 : i32
    %20 = arith.cmpi slt, %18, %c0_i32_11 : i32
    %c0_i32_12 = arith.constant 0 : i32
    %21 = arith.cmpi slt, %17, %c0_i32_12 : i32
    %22 = arith.xori %20, %21 : i1
    %23 = arith.andi %22, %19 : i1
    %24 = arith.addi %18, %17 : i32
    %25 = arith.select %23, %24, %18 : i32
    %c1_i32_13 = arith.constant 1 : i32
    %26 = arith.cmpi eq, %25, %c1_i32_13 : i32
    %27 = arith.extui %26 : i1 to i32
    %c0_i32_14 = arith.constant 0 : i32
    %28 = arith.cmpi ne, %27, %c0_i32_14 : i32
    scf.if %28 {
      %c0 = arith.constant 0 : index
      %c0_17 = arith.constant 0 : index
      %32 = vector.load %arg7[%c0, %c0_17] : memref<128x128xf32, #tpu.memory_space<vmem>>, vector<128x128xf32>
      %c0_18 = arith.constant 0 : index
      %c0_19 = arith.constant 0 : index
      %c0_20 = arith.constant 0 : index
      %33 = vector.load %arg3[%c0_18, %c0_19, %c0_20] : memref<1x128x128xf32, #tpu.memory_space<vmem>>, vector<1x128x128xf32>
      %34 = vector.shape_cast %33 : vector<1x128x128xf32> to vector<128x128xf32>
      %cst = arith.constant dense<0.000000e+00> : vector<128x128xf32>
      %35 = tpu.matmul %32, %34, %cst {dimension_numbers = #tpu.dot_dimension_numbers<[1], [0], [0], [1], [0, 0, 1, 1], [], []>} : vector<128x128xf32>, vector<128x128xf32>, vector<128x128xf32> -> vector<128x128xf32>
      %c0_21 = arith.constant 0 : index
      %c0_22 = arith.constant 0 : index
      %c0_23 = arith.constant 0 : index
      %36 = vector.load %arg4[%c0_21, %c0_22, %c0_23] : memref<1x1x128xf32, #tpu.memory_space<vmem>>, vector<1x1x128xf32>
      %37 = vector.shape_cast %36 : vector<1x1x128xf32> to vector<1x128xf32>
      %38 = vector.broadcast %37 : vector<1x128xf32> to vector<128x128xf32>
      %39 = arith.addf %35, %38 : vector<128x128xf32>
      %c2_i32_24 = arith.constant 2 : i32
      %40 = arith.cmpi ne, %arg1, %c2_i32_24 : i32
      %cst_25 = arith.constant 0.000000e+00 : f32
      %41 = vector.broadcast %cst_25 : f32 to vector<128x128xf32>
      %42 = arith.maximumf %39, %41 : vector<128x128xf32>
      %43 = arith.select %40, %42, %39 : vector<128x128xf32>
      %c0_26 = arith.constant 0 : index
      %c0_27 = arith.constant 0 : index
      %44 = vector.load %arg6[%c0_26, %c0_27] : memref<128x128xf32, #tpu.memory_space<vmem>>, vector<128x128xf32>
      tpu.vector_store %arg6[%c0_26, %c0_27], %43 {strides = array<i32>} : memref<128x128xf32, #tpu.memory_space<vmem>>, vector<128x128xf32>,
    } else {
    }
    %c2_i32_15 = arith.constant 2 : i32
    %29 = arith.cmpi eq, %arg1, %c2_i32_15 : i32
    %30 = arith.extui %29 : i1 to i32
    %c0_i32_16 = arith.constant 0 : i32
    %31 = arith.cmpi ne, %30, %c0_i32_16 : i32
    scf.if %31 {
      %c0 = arith.constant 0 : index
      %c0_17 = arith.constant 0 : index
      %32 = vector.load %arg7[%c0, %c0_17] : memref<128x128xf32, #tpu.memory_space<vmem>>, vector<128x128xf32>
      %c0_18 = arith.constant 0 : index
      %c0_19 = arith.constant 0 : index
      %33 = vector.load %arg5[%c0_18, %c0_19] : memref<128x128xf32, #tpu.memory_space<vmem>>, vector<128x128xf32>
      tpu.vector_store %arg5[%c0_18, %c0_19], %32 {strides = array<i32>} : memref<128x128xf32, #tpu.memory_space<vmem>>, vector<128x128xf32>,
    } else {
    }
    return
  }
  func.func @transform_0(%arg0: i32, %arg1: i32) -> (i32, i32) {
    %c0_i32 = arith.constant 0 : i32
    %c0_i32_0 = arith.constant 0 : i32
    return %arg0, %c0_i32 : i32, i32
  }
  func.func @transform_1(%arg0: i32, %arg1: i32) -> (i32, i32, i32) {
    %c0_i32 = arith.constant 0 : i32
    %c0_i32_0 = arith.constant 0 : i32
    %c0_i32_1 = arith.constant 0 : i32
    return %arg1, %c0_i32, %c0_i32_0 : i32, i32, i32
  }
  func.func @transform_2(%arg0: i32, %arg1: i32) -> (i32, i32, i32) {
    %c0_i32 = arith.constant 0 : i32
    %c0_i32_0 = arith.constant 0 : i32
    %c0_i32_1 = arith.constant 0 : i32
    return %arg1, %c0_i32, %c0_i32_0 : i32, i32, i32
  }
  func.func @transform_3(%arg0: i32, %arg1: i32) -> (i32, i32) {
    %c0_i32 = arith.constant 0 : i32
    %c0_i32_0 = arith.constant 0 : i32
    return %arg0, %c0_i32 : i32, i32
  }
}

</mosaic_0001>

<llo_original>
// kernel: tpu_custom_call.1
$region0: #{tpu_custom_call.1}
  #allocation0 [shape = 'u32[]', space=smem, size = 0x4, offset = 0x4, fixed_abs, tag = 'smem constant byte address 0x4 - core index']
  #allocation1 [shape = 'u32[144,128]{1,0:T(1,128)}', space=vmem, size = 0x12000, scoped, tag = 'internal scratch']
  #allocation2 [shape = 'f32[128,128]{1,0:T(8,128)}', space=vmem, size = 0x10000, scoped, tag = 'scratch operand']
  #allocation3 [shape = 'f32[128,128]{1,0:T(8,128)}', space=vmem, size = 0x10000, scoped, tag = 'scratch operand']
  %s0 = inlined_call_operand.hbm [shape: f32[256,128], index: 0, kind: input, shape index: {}]
  %s1 = inlined_call_operand.hbm [shape: f32[3,128,128], index: 1, kind: input, shape index: {}]
  %s2 = inlined_call_operand.vmem [shape: f32[3,1,128], index: 2, kind: input, shape index: {}]
  %s3 = inlined_call_operand.hbm [shape: f32[256,128], index: 3, kind: output, shape index: {}]
  %s4 = sld [smem:[#allocation0]]
  $region69: #{tpu_custom_call.1} parent=0
    _
  %s6 = ssub.s32 1, %s4
  %s7 = scalar_select 0, %s6, %s4
  $region1: #{tpu_custom_call.1} parent=0
    #allocation4 [shape = 'u8[131072]{0}', space=vmem, size = 0x20000, scoped, tag = 'input window, operand 0']
    #allocation5 [shape = 's32[2]{0}', space=sflag, size = 0x8, scoped, tag = 'scoped memory for tpu_custom_call.1']
    #allocation6 [shape = 's32[2]{0}', space=sflag, size = 0x8, scoped, tag = 'scoped memory for tpu_custom_call.1']
    #allocation7 [shape = 'u8[131072]{0}', space=vmem, size = 0x20000, scoped, tag = 'input window, operand 1']
    #allocation8 [shape = 's32[2]{0}', space=sflag, size = 0x8, scoped, tag = 'scoped memory for tpu_custom_call.1']
    #allocation9 [shape = 'u8[131072]{0}', space=vmem, size = 0x20000, scoped, tag = 'output window, operand 0']
    %8 = vsyncpa [#allocation5], 0
    %s9 = scalar_lea.sflag [#allocation5], 1
    %10 = vsyncpa %s9, 0
    %11 = vsyncpa [#allocation8], 0
    %s12 = scalar_lea.sflag [#allocation8], 1
    %13 = vsyncpa %s12, 0
    %14 = vsyncpa [#allocation6], 0
    %s15 = scalar_lea.sflag [#allocation6], 1
    %16 = vsyncpa %s15, 0
    loop: start=0, step=1, limit=8
    $region2: #{tpu_custom_call.1} parent=1 // loop_pre_header
      _
    $region3: #{tpu_custom_call.1} parent=1 // loop_header
      %s18 = sphi 0, %s22
      %p19 = scmp.ge.s32.totalorder %s18, 8
      %s25 = sphi 0, %s37
      %s26 = sphi 0, %s33
      %s27 = sphi 0, %s25
      %s28 = sphi 0, %s26
      %s29 = sphi 0, %s27
      %s30 = sphi 0, %s28
      %s40 = sphi 0, %s42
      %s43 = sphi 0, %s40
      %s44 = sphi 0, %s43
      %s60 = sphi 0, %s44
      %s66 = sphi 0, %s68
      %s69 = sphi 0, %s66
      %s70 = sphi 0, %s69
      %s86 = sphi 0, %s70
      %s92 = sphi 0, %s94
      %s95 = sphi 0, %s92
      %s96 = sphi 0, %s95
      %s112 = sphi 0, %s96
      %s118 = sphi 0, %s120
      %s121 = sphi 0, %s118
      %s122 = sphi 0, %s121
      %s138 = sphi 0, %s122
    $region4: #{tpu_custom_call.1} parent=1 // loop_header_branch
      %21 = sbr.rel (%p19) target = $region8
    $region5: #{tpu_custom_call.1} parent=1 // loop_body
      %s23 = ssub.s32 %s18, 1
      %s24 = ssub.s32 %s18, 2
      %s31 = sadd.s32 1, %s26
      %p32 = scmp.ge.s32.totalorder %s31, 3
      %s33 = scalar_select %p32, 0, %s31
      %s34 = sadd.s32 1, %s25
      %s35 = scalar_select %p32, %s34, %s25
      %p36 = scmp.ge.s32.totalorder %s35, 2
      %s37 = scalar_select %p36, 0, %s35
      %s38 = ssub.s32 %s25, %s37
      %p39 = scmp.eq.s32.totalorder %s38, 0
      %s41 = sadd.s32 %s40, 1
      %s42 = scalar_select %p39, %s40, %s41
      %p45 = pneg %p39
      %p46 = scmp.eq.s32.totalorder %s18, 5
      %p47 = por %p45, %p46
      %p48 = scmp.ne.s32.totalorder %s40, %s43
      %p49 = scmp.eq.s32.totalorder %s18, 0
      %p50 = por %p48, %p49
      %p51 = scmp.ne.s32.totalorder %s40, %s43
      %p52 = scmp.eq.s32.totalorder %s23, 5
      %p53 = por %p51, %p52
      %p54 = scmp.ne.s32.totalorder %s43, %s44
      %p55 = scmp.eq.s32.totalorder %s23, 0
      %p56 = por %p54, %p55
      %p57 = scmp.ne.s32.totalorder %s43, %s44
      %p58 = scmp.eq.s32.totalorder %s24, 5
      %p59 = por %p57, %p58
      %p61 = scmp.ne.s32.totalorder %s44, %s60
      %p62 = scmp.eq.s32.totalorder %s24, 0
      %p63 = por %p61, %p62
      %s64 = ssub.s32 %s26, %s33
      %p65 = scmp.eq.s32.totalorder %s64, 0
      %s67 = sadd.s32 %s66, 1
      %s68 = scalar_select %p65, %s66, %s67
      %p71 = pneg %p65
      %p72 = scmp.eq.s32.totalorder %s18, 5
      %p73 = por %p71, %p72
      %p74 = scmp.ne.s32.totalorder %s66, %s69
      %p75 = scmp.eq.s32.totalorder %s18, 0
      %p76 = por %p74, %p75
      %p77 = scmp.ne.s32.totalorder %s66, %s69
      %p78 = scmp.eq.s32.totalorder %s23, 5
      %p79 = por %p77, %p78
      %p80 = scmp.ne.s32.totalorder %s69, %s70
      %p81 = scmp.eq.s32.totalorder %s23, 0
      %p82 = por %p80, %p81
      %p83 = scmp.ne.s32.totalorder %s69, %s70
      %p84 = scmp.eq.s32.totalorder %s24, 5
      %p85 = por %p83, %p84
      %p87 = scmp.ne.s32.totalorder %s70, %s86
      %p88 = scmp.eq.s32.totalorder %s24, 0
      %p89 = por %p87, %p88
      %s90 = ssub.s32 %s26, %s33
      %p91 = scmp.eq.s32.totalorder %s90, 0
      %s93 = sadd.s32 %s92, 1
      %s94 = scalar_select %p91, %s92, %s93
      %p97 = pneg %p91
      %p98 = scmp.eq.s32.totalorder %s18, 5
      %p99 = por %p97, %p98
      %p100 = scmp.ne.s32.totalorder %s92, %s95
      %p101 = scmp.eq.s32.totalorder %s18, 0
      %p102 = por %p100, %p101
      %p103 = scmp.ne.s32.totalorder %s92, %s95
      %p104 = scmp.eq.s32.totalorder %s23, 5
      %p105 = por %p103, %p104
      %p106 = scmp.ne.s32.totalorder %s95, %s96
      %p107 = scmp.eq.s32.totalorder %s23, 0
      %p108 = por %p106, %p107
      %p109 = scmp.ne.s32.totalorder %s95, %s96
      %p110 = scmp.eq.s32.totalorder %s24, 5
      %p111 = por %p109, %p110
      %p113 = scmp.ne.s32.totalorder %s96, %s112
      %p114 = scmp.eq.s32.totalorder %s24, 0
      %p115 = por %p113, %p114
      %s116 = ssub.s32 %s25, %s37
      %p117 = scmp.eq.s32.totalorder %s116, 0
      %s119 = sadd.s32 %s118, 1
      %s120 = scalar_select %p117, %s118, %s119
      %p123 = pneg %p117
      %p124 = scmp.eq.s32.totalorder %s18, 5
      %p125 = por %p123, %p124
      %p126 = scmp.ne.s32.totalorder %s118, %s121
      %p127 = scmp.eq.s32.totalorder %s18, 0
      %p128 = por %p126, %p127
      %p129 = scmp.ne.s32.totalorder %s118, %s121
      %p130 = scmp.eq.s32.totalorder %s23, 5
      %p131 = por %p129, %p130
      %p132 = scmp.ne.s32.totalorder %s121, %s122
      %p133 = scmp.eq.s32.totalorder %s23, 0
      %p134 = por %p132, %p133
      %p135 = scmp.ne.s32.totalorder %s121, %s122
      %p136 = scmp.eq.s32.totalorder %s24, 5
      %p137 = por %p135, %p136
      %p139 = scmp.ne.s32.totalorder %s122, %s138
      %p140 = scmp.eq.s32.totalorder %s24, 0
      %p141 = por %p139, %p140
      %p142 = scmp.le.s32.totalorder 1, %s18
      %p143 = scmp.lt.s32.totalorder %s18, 7
      %p144 = pnand %p142, %p143
      %p145 = pneg %p144
      // Predicated region
      $region9: #{tpu_custom_call.1} parent=5 // pred_check
        _
      $region10: #{tpu_custom_call.1} parent=5 // pred_check_branch
        %147 = sbr.rel (%p144) target = $region12
      $region11: #{tpu_custom_call.1} parent=5 // pred_region
        %s148 = ssub.s32 %s18, 1
      $region12: #{tpu_custom_call.1} parent=5 // pred_fallthru
        _
      %p149 = scmp.lt.s32.totalorder %s18, 6
      // Predicated region
      $region13: #{tpu_custom_call.1} parent=5 // pred_check
        %p150 = pneg %p149
      $region14: #{tpu_custom_call.1} parent=5 // pred_check_branch
        %152 = sbr.rel (%p150) target = $region16
      $region15: #{tpu_custom_call.1} parent=5 // pred_region
        // Predicated region
        $region17: #{tpu_custom_call.1} parent=15 // pred_check
          %p153 = pneg %p50
        $region18: #{tpu_custom_call.1} parent=15 // pred_check_branch
          %155 = sbr.rel (%p153) target = $region20
        $region19: #{tpu_custom_call.1} parent=15 // pred_region
          %s156 = sand.u32 %s40, 1
          %s157 = scalar_lea.sflag [#allocation5], %s156
          %s158 = sand.u32 %s40, 1
          %s159 = smul.addr %s158, 128
          %s160 = scalar_lea.vmem [#allocation4], %s159
          %s161 = smul.u32 16, %s25
          %s163 = ssub.s32 2048, 2048
          %164 = vsyncadd %s157, %s163
          %s165 = smul.addr %s161, 128
          %s166 = scalar_lea.hbm %s0, %s165
          %s167 = sshll.u32 %s160, 4
          %s168 = int_to_ptr.vmem [resolvable:$true] %s167
          %173 = dma.hbm_to_vmem [thread:$0]  %s166, 2048, %s168, %s157, 128, 128, 8
        $region20: #{tpu_custom_call.1} parent=15 // pred_fallthru
          _
        // Predicated region
        $region21: #{tpu_custom_call.1} parent=15 // pred_check
          %p174 = pneg %p76
        $region22: #{tpu_custom_call.1} parent=15 // pred_check_branch
          %176 = sbr.rel (%p174) target = $region24
        $region23: #{tpu_custom_call.1} parent=15 // pred_region
          %s177 = sand.u32 %s66, 1
          %s178 = scalar_lea.sflag [#allocation8], %s177
          %s179 = sand.u32 %s66, 1
          %s180 = smul.addr %s179, 128
          %s181 = scalar_lea.vmem [#allocation7], %s180
          %s183 = ssub.s32 2048, 2048
          %184 = vsyncadd %s178, %s183
          %s185 = smul.addr %s26, 16
          %s186 = smul.addr %s185, 128
          %s187 = scalar_lea.hbm %s1, %s186
          %s188 = sshll.u32 %s181, 4
          %s189 = int_to_ptr.vmem [resolvable:$true] %s188
          %194 = dma.hbm_to_vmem [thread:$0]  %s187, 2048, %s189, %s178, 128, 128, 8
        $region24: #{tpu_custom_call.1} parent=15 // pred_fallthru
          _
        // Predicated region
        $region25: #{tpu_custom_call.1} parent=15 // pred_check
          %p195 = pneg %p102
        $region26: #{tpu_custom_call.1} parent=15 // pred_check_branch
          %197 = sbr.rel (%p195) target = $region28
        $region27: #{tpu_custom_call.1} parent=15 // pred_region
          %p198 = scmp.lt.s32.totalorder %s26, 2
          %s199 = scalar_select %p198, %s26, 2
          %s200 = scalar_lea.vmem %s2, %s199
        $region28: #{tpu_custom_call.1} parent=15 // pred_fallthru
          _
      $region16: #{tpu_custom_call.1} parent=5 // pred_fallthru
        _
      %p201 = scmp.le.s32.totalorder 1, %s18
      %p202 = scmp.lt.s32.totalorder %s18, 7
      %p203 = pnand %p201, %p202
      %p204 = pneg %p203
      // Predicated region
      $region29: #{tpu_custom_call.1} parent=5 // pred_check
        _
      $region30: #{tpu_custom_call.1} parent=5 // pred_check_branch
        %206 = sbr.rel (%p203) target = $region32
      $region31: #{tpu_custom_call.1} parent=5 // pred_region
        %s207 = ssub.s32 %s18, 1
        %s208 = sand.u32 %s43, 1
        %s209 = scalar_lea.sflag [#allocation5], %s208
        %s210 = sand.u32 %s43, 1
        %s211 = smul.addr %s210, 128
        %s212 = scalar_lea.vmem [#allocation4], %s211
        // Predicated region
        $region33: #{tpu_custom_call.1} parent=31 // pred_check
          %p213 = pneg %p56
        $region34: #{tpu_custom_call.1} parent=31 // pred_check_branch
          %215 = sbr.rel (%p213) target = $region36
        $region35: #{tpu_custom_call.1} parent=31 // pred_region
          %216 = dma.done %s209, 2048
        $region36: #{tpu_custom_call.1} parent=31 // pred_fallthru
          _
        %s217 = sand.u32 %s69, 1
        %s218 = scalar_lea.sflag [#allocation8], %s217
        %s219 = sand.u32 %s69, 1
        %s220 = smul.addr %s219, 128
        %s221 = scalar_lea.vmem [#allocation7], %s220
        // Predicated region
        $region37: #{tpu_custom_call.1} parent=31 // pred_check
          %p222 = pneg %p82
        $region38: #{tpu_custom_call.1} parent=31 // pred_check_branch
          %224 = sbr.rel (%p222) target = $region40
        $region39: #{tpu_custom_call.1} parent=31 // pred_region
          %225 = dma.done %s218, 2048
        $region40: #{tpu_custom_call.1} parent=31 // pred_fallthru
          _
        %s226 = sand.u32 %s43, 1
        %s227 = scalar_lea.sflag [#allocation5], %s226
        %s228 = sand.u32 %s43, 1
        %s229 = smul.addr %s228, 128
        %s230 = scalar_lea.vmem [#allocation4], %s229
        %p231 = pneg %p56
        %p232 = pneg %p53
        %s233 = sand.u32 %s69, 1
        %s234 = scalar_lea.sflag [#allocation8], %s233
        %s235 = sand.u32 %s69, 1
        %s236 = smul.addr %s235, 128
        %s237 = scalar_lea.vmem [#allocation7], %s236
        %p238 = pneg %p82
        %p239 = pneg %p79
        %p240 = scmp.lt.s32.totalorder %s28, 2
        %s241 = scalar_select %p240, %s28, 2
        %s242 = scalar_lea.vmem %s2, %s241
        %p243 = pneg %p108
        %p244 = pneg %p105
        %p245 = pneg %p134
        %p246 = pneg %p131
        %s247 = sand.u32 %s121, 1
        %s248 = scalar_lea.sflag [#allocation6], %s247
        %s249 = sand.u32 %s121, 1
        %s250 = smul.addr %s249, 128
        %s251 = scalar_lea.vmem [#allocation9], %s250
        %s252 = smul.u32 16, %s27
        %p253 = scmp.lt.s32.totalorder %s28, 2
        %s254 = scalar_select %p253, %s28, 2
        %s255 = scalar_lea.vmem %s2, %s254
        %s256 = smul.u32 16, %s27
        %p257 = scmp.eq.s32.totalorder %s28, 0
        // Predicated region
        $region41: #{tpu_custom_call.1} parent=31 // pred_check
          %p258 = pneg %p257
        $region42: #{tpu_custom_call.1} parent=31 // pred_check_branch
          %260 = sbr.rel (%p258) target = $region44
        $region43: #{tpu_custom_call.1} parent=31 // pred_region
          %v261 = vld [vmem:[%s212] sm:$0xff]
          %v262 = vld [vmem:[%s212 + $0x8] sm:$0xff]
          %v263 = vld [vmem:[%s212 + $0x10] sm:$0xff]
          %v264 = vld [vmem:[%s212 + $0x18] sm:$0xff]
          %v265 = vld [vmem:[%s212 + $0x20] sm:$0xff]
          %v266 = vld [vmem:[%s212 + $0x28] sm:$0xff]
          %v267 = vld [vmem:[%s212 + $0x30] sm:$0xff]
          %v268 = vld [vmem:[%s212 + $0x38] sm:$0xff]
          %v269 = vld [vmem:[%s212 + $0x40] sm:$0xff]
          %v270 = vld [vmem:[%s212 + $0x48] sm:$0xff]
          %v271 = vld [vmem:[%s212 + $0x50] sm:$0xff]
          %v272 = vld [vmem:[%s212 + $0x58] sm:$0xff]
          %v273 = vld [vmem:[%s212 + $0x60] sm:$0xff]
          %v274 = vld [vmem:[%s212 + $0x68] sm:$0xff]
          %v275 = vld [vmem:[%s212 + $0x70] sm:$0xff]
          %v276 = vld [vmem:[%s212 + $0x78] sm:$0xff]
          %277 = vst [vmem:[#allocation2] sm:$0xff] %v261
          %278 = vst [vmem:[#allocation2 + $0x8] sm:$0xff] %v262
          %279 = vst [vmem:[#allocation2 + $0x10] sm:$0xff] %v263
          %280 = vst [vmem:[#allocation2 + $0x18] sm:$0xff] %v264
          %281 = vst [vmem:[#allocation2 + $0x20] sm:$0xff] %v265
          %282 = vst [vmem:[#allocation2 + $0x28] sm:$0xff] %v266
          %283 = vst [vmem:[#allocation2 + $0x30] sm:$0xff] %v267
          %284 = vst [vmem:[#allocation2 + $0x38] sm:$0xff] %v268
          %285 = vst [vmem:[#allocation2 + $0x40] sm:$0xff] %v269
          %286 = vst [vmem:[#allocation2 + $0x48] sm:$0xff] %v270
          %287 = vst [vmem:[#allocation2 + $0x50] sm:$0xff] %v271
          %288 = vst [vmem:[#allocation2 + $0x58] sm:$0xff] %v272
          %289 = vst [vmem:[#allocation2 + $0x60] sm:$0xff] %v273
          %290 = vst [vmem:[#allocation2 + $0x68] sm:$0xff] %v274
          %291 = vst [vmem:[#allocation2 + $0x70] sm:$0xff] %v275
          %292 = vst [vmem:[#allocation2 + $0x78] sm:$0xff] %v276
        $region44: #{tpu_custom_call.1} parent=31 // pred_fallthru
          _
        %p293 = scmp.lt.s32.totalorder %s28, 0
        %s294 = ssub.s32 0, %s28
        %s295 = scalar_select %p293, %s294, %s28
        %s296 = sand.u32 %s295, 1
        %s297 = ssub.s32 0, %s296
        %s298 = scalar_select %p293, %s297, %s296
        %p299 = scmp.ne.s32.totalorder %s298, 0
        %p300 = scmp.lt.s32.totalorder %s298, 0
        %p301 = pnand %p300, %p299
        %p302 = pneg %p301
        %s303 = sadd.s32 %s298, 2
        %s304 = scalar_select %p302, %s303, %s298
        %p305 = scmp.eq.s32.totalorder %s304, 0
        // Predicated region
        $region45: #{tpu_custom_call.1} parent=31 // pred_check
          %p306 = pneg %p305
        $region46: #{tpu_custom_call.1} parent=31 // pred_check_branch
          %308 = sbr.rel (%p306) target = $region48
        $region47: #{tpu_custom_call.1} parent=31 // pred_region
          %v309 = vld [vmem:[#allocation2] sm:$0xff]
          %v310 = vld [vmem:[#allocation2 + $0x8] sm:$0xff]
          %v311 = vld [vmem:[#allocation2 + $0x10] sm:$0xff]
          %v312 = vld [vmem:[#allocation2 + $0x18] sm:$0xff]
          %v313 = vld [vmem:[#allocation2 + $0x20] sm:$0xff]
          %v314 = vld [vmem:[#allocation2 + $0x28] sm:$0xff]
          %v315 = vld [vmem:[#allocation2 + $0x30] sm:$0xff]
          %v316 = vld [vmem:[#allocation2 + $0x38] sm:$0xff]
          %v317 = vld [vmem:[#allocation2 + $0x40] sm:$0xff]
          %v318 = vld [vmem:[#allocation2 + $0x48] sm:$0xff]
          %v319 = vld [vmem:[#allocation2 + $0x50] sm:$0xff]
          %v320 = vld [vmem:[#allocation2 + $0x58] sm:$0xff]
          %v321 = vld [vmem:[#allocation2 + $0x60] sm:$0xff]
          %v322 = vld [vmem:[#allocation2 + $0x68] sm:$0xff]
          %v323 = vld [vmem:[#allocation2 + $0x70] sm:$0xff]
          %v324 = vld [vmem:[#allocation2 + $0x78] sm:$0xff]
          %v325 = vld [vmem:[%s221] sm:$0xff]
          %v326 = vld [vmem:[%s221 + $0x8] sm:$0xff]
          %v327 = vld [vmem:[%s221 + $0x10] sm:$0xff]
          %v328 = vld [vmem:[%s221 + $0x18] sm:$0xff]
          %v329 = vld [vmem:[%s221 + $0x20] sm:$0xff]
          %v330 = vld [vmem:[%s221 + $0x28] sm:$0xff]
          %v331 = vld [vmem:[%s221 + $0x30] sm:$0xff]
          %v332 = vld [vmem:[%s221 + $0x38] sm:$0xff]
          %v333 = vld [vmem:[%s221 + $0x40] sm:$0xff]
          %v334 = vld [vmem:[%s221 + $0x48] sm:$0xff]
          %v335 = vld [vmem:[%s221 + $0x50] sm:$0xff]
          %v336 = vld [vmem:[%s221 + $0x58] sm:$0xff]
          %v337 = vld [vmem:[%s221 + $0x60] sm:$0xff]
          %v338 = vld [vmem:[%s221 + $0x68] sm:$0xff]
          %v339 = vld [vmem:[%s221 + $0x70] sm:$0xff]
          %v340 = vld [vmem:[%s221 + $0x78] sm:$0xff]
          %v341 = vld [vmem:[%s255] sm:$0x1]
          %v343 = vlaneseq
          %v344 = vshrl.u32 %v343, 7
          %v345 = vsub.s32 0, %v344
          %v346 = vrot.slane %v341, %v345
          %348 = vmatprep.subr.mxu0 0.0
          %349 = vmatpush1.msra.mxu0 %v325
          %350 = vmatprep.subr.mxu0 0.0
          %351 = vmatpush1.msra.mxu0 %v326
          %352 = vmatprep.subr.mxu0 0.0
          %353 = vmatpush1.msra.mxu0 %v327
          %354 = vmatprep.subr.mxu0 0.0
          %355 = vmatpush1.msra.mxu0 %v328
          %356 = vmatprep.subr.mxu0 0.0
          %357 = vmatpush1.msra.mxu0 %v329
          %358 = vmatprep.subr.mxu0 0.0
          %359 = vmatpush1.msra.mxu0 %v330
          %360 = vmatprep.subr.mxu0 0.0
          %361 = vmatpush1.msra.mxu0 %v331
          %362 = vmatprep.subr.mxu0 0.0
          %363 = vmatpush1.msra.mxu0 %v332
          %364 = vmatprep.subr.mxu0 0.0
          %365 = vmatpush1.msra.mxu0 %v333
          %366 = vmatprep.subr.mxu0 0.0
          %367 = vmatpush1.msra.mxu0 %v334
          %368 = vmatprep.subr.mxu0 0.0
          %369 = vmatpush1.msra.mxu0 %v335
          %370 = vmatprep.subr.mxu0 0.0
          %371 = vmatpush1.msra.mxu0 %v336
          %372 = vmatprep.subr.mxu0 0.0
          %373 = vmatpush1.msra.mxu0 %v337
          %374 = vmatprep.subr.mxu0 0.0
          %375 = vmatpush1.msra.mxu0 %v338
          %376 = vmatprep.subr.mxu0 0.0
          %377 = vmatpush1.msra.mxu0 %v339
          %378 = vmatprep.subr.mxu0 0.0
          %379 = vmatpush1.msra.mxu0 %v340
          %380 = vmatprep.subr.mxu0 0.0
          %381 = vmatpush1.msra.mxu0 0.0
          %382 = vmatprep.subr.mxu0 0.0
          %383 = vmatpush1.msra.mxu0 0.0
          %384 = vmatprep.subr.mxu0 0.0
          %385 = vmatpush1.msra.mxu0 0.0
          %386 = vmatprep.subr.mxu0 0.0
          %387 = vmatpush1.msra.mxu0 0.0
          %388 = vmatprep.subr.mxu0 0.0
          %389 = vmatpush1.msra.mxu0 0.0
          %390 = vmatprep.subr.mxu0 0.0
          %391 = vmatpush1.msra.mxu0 0.0
          %392 = vmatprep.subr.mxu0 0.0
          %393 = vmatpush1.msra.mxu0 0.0
          %394 = vmatprep.subr.mxu0 0.0
          %395 = vmatpush1.msra.mxu0 0.0
          %396 = vmatprep.subr.mxu0 0.0
          %397 = vmatpush1.msra.mxu0 0.0
          %398 = vmatprep.subr.mxu0 0.0
          %399 = vmatpush1.msra.mxu0 0.0
          %400 = vmatprep.subr.mxu0 0.0
          %401 = vmatpush1.msra.mxu0 0.0
          %402 = vmatprep.subr.mxu0 0.0
          %403 = vmatpush1.msra.mxu0 0.0
          %404 = vmatprep.subr.mxu0 0.0
          %405 = vmatpush1.msra.mxu0 0.0
          %406 = vmatprep.subr.mxu0 0.0
          %407 = vmatpush1.msra.mxu0 0.0
          %408 = vmatprep.subr.mxu0 0.0
          %409 = vmatpush1.msra.mxu0 0.0
          %410 = vmatprep.subr.mxu0 0.0
          %411 = vmatpush1.msra.mxu0 0.0
          %412 = vmatprep.mubr.f32.mxu0 0.0
          %413 = vmatmul.mubr.f32.gmra.mrb[0].mxu0 %v309
          %v414 = vpop.f32.mrb[0].mxu0
          %v415 = vadd.f32 %v346, %v414
          %v416 = vpop.f32.mrb[0].mxu0
          %417 = vmatprep.mubr.f32.mxu0 0.0
          %418 = vmatmul.mubr.f32.gmra.mrb[0].mxu0 %v310
          %v419 = vpop.f32.mrb[0].mxu0
          %v420 = vadd.f32 %v346, %v419
          %v421 = vpop.f32.mrb[0].mxu0
          %422 = vmatprep.mubr.f32.mxu0 0.0
          %423 = vmatmul.mubr.f32.gmra.mrb[0].mxu0 %v311
          %v424 = vpop.f32.mrb[0].mxu0
          %v425 = vadd.f32 %v346, %v424
          %v426 = vpop.f32.mrb[0].mxu0
          %427 = vmatprep.mubr.f32.mxu0 0.0
          %428 = vmatmul.mubr.f32.gmra.mrb[0].mxu0 %v312
          %v429 = vpop.f32.mrb[0].mxu0
          %v430 = vadd.f32 %v346, %v429
          %v431 = vpop.f32.mrb[0].mxu0
          %432 = vmatprep.mubr.f32.mxu0 0.0
          %433 = vmatmul.mubr.f32.gmra.mrb[0].mxu0 %v313
          %v434 = vpop.f32.mrb[0].mxu0
          %v435 = vadd.f32 %v346, %v434
          %v436 = vpop.f32.mrb[0].mxu0
          %437 = vmatprep.mubr.f32.mxu0 0.0
          %438 = vmatmul.mubr.f32.gmra.mrb[0].mxu0 %v314
          %v439 = vpop.f32.mrb[0].mxu0
          %v440 = vadd.f32 %v346, %v439
          %v441 = vpop.f32.mrb[0].mxu0
          %442 = vmatprep.mubr.f32.mxu0 0.0
          %443 = vmatmul.mubr.f32.gmra.mrb[0].mxu0 %v315
          %v444 = vpop.f32.mrb[0].mxu0
          %v445 = vadd.f32 %v346, %v444
          %v446 = vpop.f32.mrb[0].mxu0
          %447 = vmatprep.mubr.f32.mxu0 0.0
          %448 = vmatmul.mubr.f32.gmra.mrb[0].mxu0 %v316
          %v449 = vpop.f32.mrb[0].mxu0
          %v450 = vadd.f32 %v346, %v449
          %v451 = vpop.f32.mrb[0].mxu0
          %452 = vmatprep.mubr.f32.mxu0 0.0
          %453 = vmatmul.mubr.f32.gmra.mrb[0].mxu0 %v317
          %v454 = vpop.f32.mrb[0].mxu0
          %v455 = vadd.f32 %v346, %v454
          %v456 = vpop.f32.mrb[0].mxu0
          %457 = vmatprep.mubr.f32.mxu0 0.0
          %458 = vmatmul.mubr.f32.gmra.mrb[0].mxu0 %v318
          %v459 = vpop.f32.mrb[0].mxu0
          %v460 = vadd.f32 %v346, %v459
          %v461 = vpop.f32.mrb[0].mxu0
          %462 = vmatprep.mubr.f32.mxu0 0.0
          %463 = vmatmul.mubr.f32.gmra.mrb[0].mxu0 %v319
          %v464 = vpop.f32.mrb[0].mxu0
          %v465 = vadd.f32 %v346, %v464
          %v466 = vpop.f32.mrb[0].mxu0
          %467 = vmatprep.mubr.f32.mxu0 0.0
          %468 = vmatmul.mubr.f32.gmra.mrb[0].mxu0 %v320
          %v469 = vpop.f32.mrb[0].mxu0
          %v470 = vadd.f32 %v346, %v469
          %v471 = vpop.f32.mrb[0].mxu0
          %472 = vmatprep.mubr.f32.mxu0 0.0
          %473 = vmatmul.mubr.f32.gmra.mrb[0].mxu0 %v321
          %v474 = vpop.f32.mrb[0].mxu0
          %v475 = vadd.f32 %v346, %v474
          %v476 = vpop.f32.mrb[0].mxu0
          %477 = vmatprep.mubr.f32.mxu0 0.0
          %478 = vmatmul.mubr.f32.gmra.mrb[0].mxu0 %v322
          %v479 = vpop.f32.mrb[0].mxu0
          %v480 = vadd.f32 %v346, %v479
          %v481 = vpop.f32.mrb[0].mxu0
          %482 = vmatprep.mubr.f32.mxu0 0.0
          %483 = vmatmul.mubr.f32.gmra.mrb[0].mxu0 %v323
          %v484 = vpop.f32.mrb[0].mxu0
          %v485 = vadd.f32 %v346, %v484
          %v486 = vpop.f32.mrb[0].mxu0
          %487 = vmatprep.mubr.f32.mxu0 0.0
          %488 = vmatmul.mubr.f32.gmra.mrb[0].mxu0 %v324
          %v489 = vpop.f32.mrb[0].mxu0
          %v490 = vadd.f32 %v346, %v489
          %v491 = vpop.f32.mrb[0].mxu0
          %492 = vdwg.mxu0
          %p493 = scmp.ne.s32.totalorder %s28, 2
          %v494 = vmax.f32 %v415, 0.0
          %v495 = vmax.f32 %v420, 0.0
          %v496 = vmax.f32 %v425, 0.0
          %v497 = vmax.f32 %v430, 0.0
          %v498 = vmax.f32 %v435, 0.0
          %v499 = vmax.f32 %v440, 0.0
          %v500 = vmax.f32 %v445, 0.0
          %v501 = vmax.f32 %v450, 0.0
          %v502 = vmax.f32 %v455, 0.0
          %v503 = vmax.f32 %v460, 0.0
          %v504 = vmax.f32 %v465, 0.0
          %v505 = vmax.f32 %v470, 0.0
          %v506 = vmax.f32 %v475, 0.0
          %v507 = vmax.f32 %v480, 0.0
          %v508 = vmax.f32 %v485, 0.0
          %v509 = vmax.f32 %v490, 0.0
          %s510 = scalar_select %p493, 1, 0
          %v511 = vstv %s510
          %vm512 = vcmp.eq.s32.totalorder %v511, 1
          %v513 = vsel %vm512, %v494, %v415
          %v514 = vsel %vm512, %v495, %v420
          %v515 = vsel %vm512, %v496, %v425
          %v516 = vsel %vm512, %v497, %v430
          %v517 = vsel %vm512, %v498, %v435
          %v518 = vsel %vm512, %v499, %v440
          %v519 = vsel %vm512, %v500, %v445
          %v520 = vsel %vm512, %v501, %v450
          %v521 = vsel %vm512, %v502, %v455
          %v522 = vsel %vm512, %v503, %v460
          %v523 = vsel %vm512, %v504, %v465
          %v524 = vsel %vm512, %v505, %v470
          %v525 = vsel %vm512, %v506, %v475
          %v526 = vsel %vm512, %v507, %v480
          %v527 = vsel %vm512, %v508, %v485
          %v528 = vsel %vm512, %v509, %v490
          %529 = vst [vmem:[#allocation3] sm:$0xff] %v513
          %530 = vst [vmem:[#allocation3 + $0x8] sm:$0xff] %v514
          %531 = vst [vmem:[#allocation3 + $0x10] sm:$0xff] %v515
          %532 = vst [vmem:[#allocation3 + $0x18] sm:$0xff] %v516
          %533 = vst [vmem:[#allocation3 + $0x20] sm:$0xff] %v517
          %534 = vst [vmem:[#allocation3 + $0x28] sm:$0xff] %v518
          %535 = vst [vmem:[#allocation3 + $0x30] sm:$0xff] %v519
          %536 = vst [vmem:[#allocation3 + $0x38] sm:$0xff] %v520
          %537 = vst [vmem:[#allocation3 + $0x40] sm:$0xff] %v521
          %538 = vst [vmem:[#allocation3 + $0x48] sm:$0xff] %v522
          %539 = vst [vmem:[#allocation3 + $0x50] sm:$0xff] %v523
          %540 = vst [vmem:[#allocation3 + $0x58] sm:$0xff] %v524
          %541 = vst [vmem:[#allocation3 + $0x60] sm:$0xff] %v525
          %542 = vst [vmem:[#allocation3 + $0x68] sm:$0xff] %v526
          %543 = vst [vmem:[#allocation3 + $0x70] sm:$0xff] %v527
          %544 = vst [vmem:[#allocation3 + $0x78] sm:$0xff] %v528
        $region48: #{tpu_custom_call.1} parent=31 // pred_fallthru
          _
        %p545 = scmp.eq.s32.totalorder %s304, 1
        // Predicated region
        $region49: #{tpu_custom_call.1} parent=31 // pred_check
          %p546 = pneg %p545
        $region50: #{tpu_custom_call.1} parent=31 // pred_check_branch
          %548 = sbr.rel (%p546) target = $region52
        $region51: #{tpu_custom_call.1} parent=31 // pred_region
          %v549 = vld [vmem:[#allocation3] sm:$0xff]
          %v550 = vld [vmem:[#allocation3 + $0x8] sm:$0xff]
          %v551 = vld [vmem:[#allocation3 + $0x10] sm:$0xff]
          %v552 = vld [vmem:[#allocation3 + $0x18] sm:$0xff]
          %v553 = vld [vmem:[#allocation3 + $0x20] sm:$0xff]
          %v554 = vld [vmem:[#allocation3 + $0x28] sm:$0xff]
          %v555 = vld [vmem:[#allocation3 + $0x30] sm:$0xff]
          %v556 = vld [vmem:[#allocation3 + $0x38] sm:$0xff]
          %v557 = vld [vmem:[#allocation3 + $0x40] sm:$0xff]
          %v558 = vld [vmem:[#allocation3 + $0x48] sm:$0xff]
          %v559 = vld [vmem:[#allocation3 + $0x50] sm:$0xff]
          %v560 = vld [vmem:[#allocation3 + $0x58] sm:$0xff]
          %v561 = vld [vmem:[#allocation3 + $0x60] sm:$0xff]
          %v562 = vld [vmem:[#allocation3 + $0x68] sm:$0xff]
          %v563 = vld [vmem:[#allocation3 + $0x70] sm:$0xff]
          %v564 = vld [vmem:[#allocation3 + $0x78] sm:$0xff]
          %v565 = vld [vmem:[%s221] sm:$0xff]
          %v566 = vld [vmem:[%s221 + $0x8] sm:$0xff]
          %v567 = vld [vmem:[%s221 + $0x10] sm:$0xff]
          %v568 = vld [vmem:[%s221 + $0x18] sm:$0xff]
          %v569 = vld [vmem:[%s221 + $0x20] sm:$0xff]
          %v570 = vld [vmem:[%s221 + $0x28] sm:$0xff]
          %v571 = vld [vmem:[%s221 + $0x30] sm:$0xff]
          %v572 = vld [vmem:[%s221 + $0x38] sm:$0xff]
          %v573 = vld [vmem:[%s221 + $0x40] sm:$0xff]
          %v574 = vld [vmem:[%s221 + $0x48] sm:$0xff]
          %v575 = vld [vmem:[%s221 + $0x50] sm:$0xff]
          %v576 = vld [vmem:[%s221 + $0x58] sm:$0xff]
          %v577 = vld [vmem:[%s221 + $0x60] sm:$0xff]
          %v578 = vld [vmem:[%s221 + $0x68] sm:$0xff]
          %v579 = vld [vmem:[%s221 + $0x70] sm:$0xff]
          %v580 = vld [vmem:[%s221 + $0x78] sm:$0xff]
          %v581 = vld [vmem:[%s255] sm:$0x1]
          %v583 = vlaneseq
          %v584 = vshrl.u32 %v583, 7
          %v585 = vsub.s32 0, %v584
          %v586 = vrot.slane %v581, %v585
          %588 = vmatprep.subr.mxu0 0.0
          %589 = vmatpush1.msra.mxu0 %v565
          %590 = vmatprep.subr.mxu0 0.0
          %591 = vmatpush1.msra.mxu0 %v566
          %592 = vmatprep.subr.mxu0 0.0
          %593 = vmatpush1.msra.mxu0 %v567
          %594 = vmatprep.subr.mxu0 0.0
          %595 = vmatpush1.msra.mxu0 %v568
          %596 = vmatprep.subr.mxu0 0.0
          %597 = vmatpush1.msra.mxu0 %v569
          %598 = vmatprep.subr.mxu0 0.0
          %599 = vmatpush1.msra.mxu0 %v570
          %600 = vmatprep.subr.mxu0 0.0
          %601 = vmatpush1.msra.mxu0 %v571
          %602 = vmatprep.subr.mxu0 0.0
          %603 = vmatpush1.msra.mxu0 %v572
          %604 = vmatprep.subr.mxu0 0.0
          %605 = vmatpush1.msra.mxu0 %v573
          %606 = vmatprep.subr.mxu0 0.0
          %607 = vmatpush1.msra.mxu0 %v574
          %608 = vmatprep.subr.mxu0 0.0
          %609 = vmatpush1.msra.mxu0 %v575
          %610 = vmatprep.subr.mxu0 0.0
          %611 = vmatpush1.msra.mxu0 %v576
          %612 = vmatprep.subr.mxu0 0.0
          %613 = vmatpush1.msra.mxu0 %v577
          %614 = vmatprep.subr.mxu0 0.0
          %615 = vmatpush1.msra.mxu0 %v578
          %616 = vmatprep.subr.mxu0 0.0
          %617 = vmatpush1.msra.mxu0 %v579
          %618 = vmatprep.subr.mxu0 0.0
          %619 = vmatpush1.msra.mxu0 %v580
          %620 = vmatprep.subr.mxu0 0.0
          %621 = vmatpush1.msra.mxu0 0.0
          %622 = vmatprep.subr.mxu0 0.0
          %623 = vmatpush1.msra.mxu0 0.0
          %624 = vmatprep.subr.mxu0 0.0
          %625 = vmatpush1.msra.mxu0 0.0
          %626 = vmatprep.subr.mxu0 0.0
          %627 = vmatpush1.msra.mxu0 0.0
          %628 = vmatprep.subr.mxu0 0.0
          %629 = vmatpush1.msra.mxu0 0.0
          %630 = vmatprep.subr.mxu0 0.0
          %631 = vmatpush1.msra.mxu0 0.0
          %632 = vmatprep.subr.mxu0 0.0
          %633 = vmatpush1.msra.mxu0 0.0
          %634 = vmatprep.subr.mxu0 0.0
          %635 = vmatpush1.msra.mxu0 0.0
          %636 = vmatprep.subr.mxu0 0.0
          %637 = vmatpush1.msra.mxu0 0.0
          %638 = vmatprep.subr.mxu0 0.0
          %639 = vmatpush1.msra.mxu0 0.0
          %640 = vmatprep.subr.mxu0 0.0
          %641 = vmatpush1.msra.mxu0 0.0
          %642 = vmatprep.subr.mxu0 0.0
          %643 = vmatpush1.msra.mxu0 0.0
          %644 = vmatprep.subr.mxu0 0.0
          %645 = vmatpush1.msra.mxu0 0.0
          %646 = vmatprep.subr.mxu0 0.0
          %647 = vmatpush1.msra.mxu0 0.0
          %648 = vmatprep.subr.mxu0 0.0
          %649 = vmatpush1.msra.mxu0 0.0
          %650 = vmatprep.subr.mxu0 0.0
          %651 = vmatpush1.msra.mxu0 0.0
          %652 = vmatprep.mubr.f32.mxu0 0.0
          %653 = vmatmul.mubr.f32.gmra.mrb[0].mxu0 %v549
          %v654 = vpop.f32.mrb[0].mxu0
          %v655 = vadd.f32 %v586, %v654
          %v656 = vpop.f32.mrb[0].mxu0
          %657 = vmatprep.mubr.f32.mxu0 0.0
          %658 = vmatmul.mubr.f32.gmra.mrb[0].mxu0 %v550
          %v659 = vpop.f32.mrb[0].mxu0
          %v660 = vadd.f32 %v586, %v659
          %v661 = vpop.f32.mrb[0].mxu0
          %662 = vmatprep.mubr.f32.mxu0 0.0
          %663 = vmatmul.mubr.f32.gmra.mrb[0].mxu0 %v551
          %v664 = vpop.f32.mrb[0].mxu0
          %v665 = vadd.f32 %v586, %v664
          %v666 = vpop.f32.mrb[0].mxu0
          %667 = vmatprep.mubr.f32.mxu0 0.0
          %668 = vmatmul.mubr.f32.gmra.mrb[0].mxu0 %v552
          %v669 = vpop.f32.mrb[0].mxu0
          %v670 = vadd.f32 %v586, %v669
          %v671 = vpop.f32.mrb[0].mxu0
          %672 = vmatprep.mubr.f32.mxu0 0.0
          %673 = vmatmul.mubr.f32.gmra.mrb[0].mxu0 %v553
          %v674 = vpop.f32.mrb[0].mxu0
          %v675 = vadd.f32 %v586, %v674
          %v676 = vpop.f32.mrb[0].mxu0
          %677 = vmatprep.mubr.f32.mxu0 0.0
          %678 = vmatmul.mubr.f32.gmra.mrb[0].mxu0 %v554
          %v679 = vpop.f32.mrb[0].mxu0
          %v680 = vadd.f32 %v586, %v679
          %v681 = vpop.f32.mrb[0].mxu0
          %682 = vmatprep.mubr.f32.mxu0 0.0
          %683 = vmatmul.mubr.f32.gmra.mrb[0].mxu0 %v555
          %v684 = vpop.f32.mrb[0].mxu0
          %v685 = vadd.f32 %v586, %v684
          %v686 = vpop.f32.mrb[0].mxu0
          %687 = vmatprep.mubr.f32.mxu0 0.0
          %688 = vmatmul.mubr.f32.gmra.mrb[0].mxu0 %v556
          %v689 = vpop.f32.mrb[0].mxu0
          %v690 = vadd.f32 %v586, %v689
          %v691 = vpop.f32.mrb[0].mxu0
          %692 = vmatprep.mubr.f32.mxu0 0.0
          %693 = vmatmul.mubr.f32.gmra.mrb[0].mxu0 %v557
          %v694 = vpop.f32.mrb[0].mxu0
          %v695 = vadd.f32 %v586, %v694
          %v696 = vpop.f32.mrb[0].mxu0
          %697 = vmatprep.mubr.f32.mxu0 0.0
          %698 = vmatmul.mubr.f32.gmra.mrb[0].mxu0 %v558
          %v699 = vpop.f32.mrb[0].mxu0
          %v700 = vadd.f32 %v586, %v699
          %v701 = vpop.f32.mrb[0].mxu0
          %702 = vmatprep.mubr.f32.mxu0 0.0
          %703 = vmatmul.mubr.f32.gmra.mrb[0].mxu0 %v559
          %v704 = vpop.f32.mrb[0].mxu0
          %v705 = vadd.f32 %v586, %v704
          %v706 = vpop.f32.mrb[0].mxu0
          %707 = vmatprep.mubr.f32.mxu0 0.0
          %708 = vmatmul.mubr.f32.gmra.mrb[0].mxu0 %v560
          %v709 = vpop.f32.mrb[0].mxu0
          %v710 = vadd.f32 %v586, %v709
          %v711 = vpop.f32.mrb[0].mxu0
          %712 = vmatprep.mubr.f32.mxu0 0.0
          %713 = vmatmul.mubr.f32.gmra.mrb[0].mxu0 %v561
          %v714 = vpop.f32.mrb[0].mxu0
          %v715 = vadd.f32 %v586, %v714
          %v716 = vpop.f32.mrb[0].mxu0
          %717 = vmatprep.mubr.f32.mxu0 0.0
          %718 = vmatmul.mubr.f32.gmra.mrb[0].mxu0 %v562
          %v719 = vpop.f32.mrb[0].mxu0
          %v720 = vadd.f32 %v586, %v719
          %v721 = vpop.f32.mrb[0].mxu0
          %722 = vmatprep.mubr.f32.mxu0 0.0
          %723 = vmatmul.mubr.f32.gmra.mrb[0].mxu0 %v563
          %v724 = vpop.f32.mrb[0].mxu0
          %v725 = vadd.f32 %v586, %v724
          %v726 = vpop.f32.mrb[0].mxu0
          %727 = vmatprep.mubr.f32.mxu0 0.0
          %728 = vmatmul.mubr.f32.gmra.mrb[0].mxu0 %v564
          %v729 = vpop.f32.mrb[0].mxu0
          %v730 = vadd.f32 %v586, %v729
          %v731 = vpop.f32.mrb[0].mxu0
          %732 = vdwg.mxu0
          %p733 = scmp.ne.s32.totalorder %s28, 2
          %v734 = vmax.f32 %v655, 0.0
          %v735 = vmax.f32 %v660, 0.0
          %v736 = vmax.f32 %v665, 0.0
          %v737 = vmax.f32 %v670, 0.0
          %v738 = vmax.f32 %v675, 0.0
          %v739 = vmax.f32 %v680, 0.0
          %v740 = vmax.f32 %v685, 0.0
          %v741 = vmax.f32 %v690, 0.0
          %v742 = vmax.f32 %v695, 0.0
          %v743 = vmax.f32 %v700, 0.0
          %v744 = vmax.f32 %v705, 0.0
          %v745 = vmax.f32 %v710, 0.0
          %v746 = vmax.f32 %v715, 0.0
          %v747 = vmax.f32 %v720, 0.0
          %v748 = vmax.f32 %v725, 0.0
          %v749 = vmax.f32 %v730, 0.0
          %s750 = scalar_select %p733, 1, 0
          %v751 = vstv %s750
          %vm752 = vcmp.eq.s32.totalorder %v751, 1
          %v753 = vsel %vm752, %v734, %v655
          %v754 = vsel %vm752, %v735, %v660
          %v755 = vsel %vm752, %v736, %v665
          %v756 = vsel %vm752, %v737, %v670
          %v757 = vsel %vm752, %v738, %v675
          %v758 = vsel %vm752, %v739, %v680
          %v759 = vsel %vm752, %v740, %v685
          %v760 = vsel %vm752, %v741, %v690
          %v761 = vsel %vm752, %v742, %v695
          %v762 = vsel %vm752, %v743, %v700
          %v763 = vsel %vm752, %v744, %v705
          %v764 = vsel %vm752, %v745, %v710
          %v765 = vsel %vm752, %v746, %v715
          %v766 = vsel %vm752, %v747, %v720
          %v767 = vsel %vm752, %v748, %v725
          %v768 = vsel %vm752, %v749, %v730
          %769 = vst [vmem:[#allocation2] sm:$0xff] %v753
          %770 = vst [vmem:[#allocation2 + $0x8] sm:$0xff] %v754
          %771 = vst [vmem:[#allocation2 + $0x10] sm:$0xff] %v755
          %772 = vst [vmem:[#allocation2 + $0x18] sm:$0xff] %v756
          %773 = vst [vmem:[#allocation2 + $0x20] sm:$0xff] %v757
          %774 = vst [vmem:[#allocation2 + $0x28] sm:$0xff] %v758
          %775 = vst [vmem:[#allocation2 + $0x30] sm:$0xff] %v759
          %776 = vst [vmem:[#allocation2 + $0x38] sm:$0xff] %v760
          %777 = vst [vmem:[#allocation2 + $0x40] sm:$0xff] %v761
          %778 = vst [vmem:[#allocation2 + $0x48] sm:$0xff] %v762
          %779 = vst [vmem:[#allocation2 + $0x50] sm:$0xff] %v763
          %780 = vst [vmem:[#allocation2 + $0x58] sm:$0xff] %v764
          %781 = vst [vmem:[#allocation2 + $0x60] sm:$0xff] %v765
          %782 = vst [vmem:[#allocation2 + $0x68] sm:$0xff] %v766
          %783 = vst [vmem:[#allocation2 + $0x70] sm:$0xff] %v767
          %784 = vst [vmem:[#allocation2 + $0x78] sm:$0xff] %v768
        $region52: #{tpu_custom_call.1} parent=31 // pred_fallthru
          _
        %p785 = scmp.eq.s32.totalorder %s28, 2
        // Predicated region
        $region53: #{tpu_custom_call.1} parent=31 // pred_check
          %p786 = pneg %p785
        $region54: #{tpu_custom_call.1} parent=31 // pred_check_branch
          %788 = sbr.rel (%p786) target = $region56
        $region55: #{tpu_custom_call.1} parent=31 // pred_region
          %v789 = vld [vmem:[#allocation3] sm:$0xff]
          %v790 = vld [vmem:[#allocation3 + $0x8] sm:$0xff]
          %v791 = vld [vmem:[#allocation3 + $0x10] sm:$0xff]
          %v792 = vld [vmem:[#allocation3 + $0x18] sm:$0xff]
          %v793 = vld [vmem:[#allocation3 + $0x20] sm:$0xff]
          %v794 = vld [vmem:[#allocation3 + $0x28] sm:$0xff]
          %v795 = vld [vmem:[#allocation3 + $0x30] sm:$0xff]
          %v796 = vld [vmem:[#allocation3 + $0x38] sm:$0xff]
          %v797 = vld [vmem:[#allocation3 + $0x40] sm:$0xff]
          %v798 = vld [vmem:[#allocation3 + $0x48] sm:$0xff]
          %v799 = vld [vmem:[#allocation3 + $0x50] sm:$0xff]
          %v800 = vld [vmem:[#allocation3 + $0x58] sm:$0xff]
          %v801 = vld [vmem:[#allocation3 + $0x60] sm:$0xff]
          %v802 = vld [vmem:[#allocation3 + $0x68] sm:$0xff]
          %v803 = vld [vmem:[#allocation3 + $0x70] sm:$0xff]
          %v804 = vld [vmem:[#allocation3 + $0x78] sm:$0xff]
          %805 = vst [vmem:[%s251] sm:$0xff] %v789
          %806 = vst [vmem:[%s251 + $0x8] sm:$0xff] %v790
          %807 = vst [vmem:[%s251 + $0x10] sm:$0xff] %v791
          %808 = vst [vmem:[%s251 + $0x18] sm:$0xff] %v792
          %809 = vst [vmem:[%s251 + $0x20] sm:$0xff] %v793
          %810 = vst [vmem:[%s251 + $0x28] sm:$0xff] %v794
          %811 = vst [vmem:[%s251 + $0x30] sm:$0xff] %v795
          %812 = vst [vmem:[%s251 + $0x38] sm:$0xff] %v796
          %813 = vst [vmem:[%s251 + $0x40] sm:$0xff] %v797
          %814 = vst [vmem:[%s251 + $0x48] sm:$0xff] %v798
          %815 = vst [vmem:[%s251 + $0x50] sm:$0xff] %v799
          %816 = vst [vmem:[%s251 + $0x58] sm:$0xff] %v800
          %817 = vst [vmem:[%s251 + $0x60] sm:$0xff] %v801
          %818 = vst [vmem:[%s251 + $0x68] sm:$0xff] %v802
          %819 = vst [vmem:[%s251 + $0x70] sm:$0xff] %v803
          %820 = vst [vmem:[%s251 + $0x78] sm:$0xff] %v804
        $region56: #{tpu_custom_call.1} parent=31 // pred_fallthru
          _
        %s821 = sand.u32 %s121, 1
        %s822 = scalar_lea.sflag [#allocation6], %s821
        %s823 = sand.u32 %s121, 1
        %s824 = smul.addr %s823, 128
        %s825 = scalar_lea.vmem [#allocation9], %s824
        // Predicated region
        $region57: #{tpu_custom_call.1} parent=31 // pred_check
          %p826 = pneg %p131
        $region58: #{tpu_custom_call.1} parent=31 // pred_check_branch
          %828 = sbr.rel (%p826) target = $region60
        $region59: #{tpu_custom_call.1} parent=31 // pred_region
          %s829 = smul.u32 16, %s27
          %s831 = ssub.s32 2048, 2048
          %832 = vsyncadd %s822, %s831
          %s833 = smul.addr %s829, 128
          %s834 = scalar_lea.hbm %s3, %s833
          %s835 = sshll.u32 %s825, 4
          %s836 = int_to_ptr.vmem [resolvable:$true] %s835
          %841 = dma.vmem_to_hbm [thread:$0]  %s836, 2048, %s834, %s822, 128, 128, 8
        $region60: #{tpu_custom_call.1} parent=31 // pred_fallthru
          _
      $region32: #{tpu_custom_call.1} parent=5 // pred_fallthru
        _
      %p842 = scmp.le.s32.totalorder 2, %s18
      // Predicated region
      $region61: #{tpu_custom_call.1} parent=5 // pred_check
        %p843 = pneg %p842
      $region62: #{tpu_custom_call.1} parent=5 // pred_check_branch
        %845 = sbr.rel (%p843) target = $region64
      $region63: #{tpu_custom_call.1} parent=5 // pred_region
        %s846 = ssub.s32 %s18, 2
        // Predicated region
        $region65: #{tpu_custom_call.1} parent=63 // pred_check
          %p847 = pneg %p137
        $region66: #{tpu_custom_call.1} parent=63 // pred_check_branch
          %849 = sbr.rel (%p847) target = $region68
        $region67: #{tpu_custom_call.1} parent=63 // pred_region
          %s850 = sand.u32 %s122, 1
          %s851 = scalar_lea.sflag [#allocation6], %s850
          %s852 = sand.u32 %s122, 1
          %s853 = smul.addr %s852, 128
          %s854 = scalar_lea.vmem [#allocation9], %s853
          %855 = dma.done %s851, 2048
        $region68: #{tpu_custom_call.1} parent=63 // pred_fallthru
          _
      $region64: #{tpu_custom_call.1} parent=5 // pred_fallthru
        _
    $region6: #{tpu_custom_call.1} parent=1 // loop_footer
      %s22 = sadd.s32 1, %s18
    $region7: #{tpu_custom_call.1} parent=1 // loop_footer_branch
      %17 = sbr.rel target = $region3
    $region8: #{tpu_custom_call.1} parent=1 // loop_exit
      _
    %856 = vsyncpa [#allocation5], 1
    %s857 = scalar_lea.sflag [#allocation5], 1
    %858 = vsyncpa %s857, 1
    %859 = vsyncpa [#allocation8], 1
    %s860 = scalar_lea.sflag [#allocation8], 1
    %861 = vsyncpa %s860, 1
    %862 = vsyncpa [#allocation6], 1
    %s863 = scalar_lea.sflag [#allocation6], 1
    %864 = vsyncpa %s863, 1

</llo_original>
